<compile_context>
chip_gen: v7x
topology: tpu7x:2x2x1
jax: 0.10.0
libtpu: 0.0.40
codegen_flags: <defaults>
</compile_context>

<pallas_src>
import functools

import jax
import jax.numpy as jnp
from jax.experimental import pallas as pl
from jax.experimental.pallas import tpu as pltpu


_INTERMEDIATE_SLABS = 20        # allowance for live f32 temporaries, per pixel (x4 B)
_DEFAULT_TILE_PX_CAP = 131072   # default upper bound on pixels per grid step


def _vmem_capacity_bytes():
    try:
        info = pltpu.get_tpu_info()
        for attr in ("vmem_capacity_bytes", "vmem_bytes", "vmem_size_bytes"):
            v = getattr(info, attr, None)
            if v:
                return int(v)
    except Exception:
        pass
    return 64 * 1024 * 1024     # conservative fallback (v7x physical VMEM per core)


def _focal_dice_kernel(gamma, alpha, hw, n_sub_pad, tile_sub, pt_per_split,
                       tgt_is_index,
                       pred_ref, tgt_ref,
                       focal_ref, inter_ref, suma_ref, sumb_ref):
    """One (sample, split, pixel-block) grid step.

    pred_ref : (C, TILE_SUB, 128) logits tile (any float dtype; cast to f32 here).
    tgt_ref  : (C, TILE_SUB, 128) one-hot/soft target tile   (tgt_is_index=False)
               (TILE_SUB, 128)    int32 class-index tile     (tgt_is_index=True)
    focal_ref: (1, 128)  lane partial of the focal numerator for this (sample, split).
    inter/suma/sumb_ref: (C, 128) lane partials of sum(sm*tgt), sum(sm), sum(tgt).
    """
    C = pred_ref.shape[0]
    s = pl.program_id(1)
    i = pl.program_id(2)
    tile_px = tile_sub * 128

    @pl.when(i == 0)
    def _():
        focal_ref[...] = jnp.zeros_like(focal_ref)
        inter_ref[...] = jnp.zeros_like(inter_ref)
        suma_ref[...] = jnp.zeros_like(suma_ref)
        sumb_ref[...] = jnp.zeros_like(sumb_ref)

    # Per-channel dense (TILE_SUB, 128) slabs; upcast in-kernel (no wrapper astype pass).
    pred = [pred_ref[c].astype(jnp.float32) for c in range(C)]
    if tgt_is_index:
        idx = tgt_ref[...]                               # padded pixels carry class C
        onehot = [idx == c for c in range(C)]
        tgt = [oh.astype(jnp.float32) for oh in onehot]
    else:
        tgt = [tgt_ref[c].astype(jnp.float32) for c in range(C)]
        onehot = None

    # Channel softmax, unrolled over C (C-1 elementwise maxes/adds on dense slabs).
    m = pred[0]
    for c in range(1, C):
        m = jnp.maximum(m, pred[c])
    z = [p - m for p in pred]
    e = [jnp.exp(zc) for zc in z]
    denom = e[0]
    for c in range(1, C):
        denom = denom + e[c]
    inv = pl.reciprocal(denom, approx=True)              # EUP slot (cheap)
    inv = inv * (2.0 - denom * inv)                      # one Newton step -> ~f32 exact
    sm = [ec * inv for ec in e]
    log_denom = jnp.log(denom)

    if onehot is None:
        # First-max argmax over target channels (exact torch.argmax semantics, also for
        # soft targets), channel-unrolled -- no (C, TP) int32 iota is materialized.
        tmax = tgt[0]
        for c in range(1, C):
            tmax = jnp.maximum(tmax, tgt[c])
        found = jnp.zeros_like(tmax, dtype=jnp.bool_)
        onehot = []
        for c in range(C):
            is_max = tgt[c] == tmax
            onehot.append(jnp.logical_and(is_max, jnp.logical_not(found)))
            found = jnp.logical_or(found, is_max)

    # CrossEntropyLoss(weight=alpha, reduction='none'):  -alpha[t] * log_softmax[t]
    alpha_t = jnp.where(onehot[0], jnp.float32(alpha[0]), 0.0)
    z_t = jnp.where(onehot[0], z[0], 0.0)
    for c in range(1, C):
        alpha_t = jnp.where(onehot[c], jnp.float32(alpha[c]), alpha_t)
        z_t = jnp.where(onehot[c], z[c], z_t)
    ce = -alpha_t * (z_t - log_denom)

    smt = [sm[c] * tgt[c] for c in range(C)]
    pt = smt[0]
    for c in range(1, C):
        pt = pt + smt[c]
    one_m_pt = 1.0 - pt
    if float(gamma) == 2.0:
        fw = one_m_pt * one_m_pt
    else:
        fw = jnp.power(one_m_pt, jnp.float32(gamma))
    focal_contrib = fw * ce

    def _rowsum(x):                                      # (TILE_SUB, 128) -> (1, 128)
        return jnp.sum(x, axis=0, keepdims=True)

    # Target-weighted sums need no pad mask: padded pixels carry an all-zero (or
    # out-of-range-index) target, so their contribution is exactly zero.
    for c in range(C):
        inter_ref[pl.ds(c, 1), :] += _rowsum(smt[c])
        sumb_ref[pl.ds(c, 1), :] += _rowsum(tgt[c])

    def _acc(fc, sma):
        focal_ref[...] += _rowsum(fc)
        for c in range(C):
            suma_ref[pl.ds(c, 1), :] += _rowsum(sma[c])

    if n_sub_pad * 128 == hw:
        _acc(focal_contrib, sm)                          # no padded pixels at all
    else:
        gblock = s * pt_per_split + i                    # global pixel-block index
        n_full = hw // tile_px                           # blocks < n_full are all-valid

        @pl.when(gblock < n_full)
        def _():
            _acc(focal_contrib, sm)

        @pl.when(gblock >= n_full)
        def _():
            sub = jax.lax.broadcasted_iota(jnp.int32, (tile_sub, 128), 0)
            lane = jax.lax.broadcasted_iota(jnp.int32, (tile_sub, 128), 1)
            flat = sub * 128 + lane
            valid = (gblock * tile_px + flat < hw).astype(jnp.float32)
            _acc(focal_contrib * valid, [x * valid for x in sm])


def focal_dice_loss(pred, target, *, alpha=(0.25, 0.8, 0.8, 0.8), gamma=2.0,
                    reduction='mean', s1=1.0, s2=1.0, smooth=1e-5,
                    tile_px_target=None, split=None):
    """s1 * FocalLoss2(pred, target) + s2 * DiceLoss(mode='batch')(pred, target).

    pred: (N, C, H, W) logits.  target: either the module's (N, C, H, W) one-hot/soft
    tensor, or -- bandwidth-saving fast path, exactly equivalent for one-hot targets --
    an integer class-index map of shape (N, H, W).
    """
    N, C, H, W = pred.shape
    assert len(alpha) == C
    HW = H * W

    tgt_is_index = (target.ndim == 3)
    if tgt_is_index:
        assert target.shape == (N, H, W)
    else:
        assert target.shape == pred.shape

    # ---- tile / VMEM budgeting (generation-aware via VMEM capacity) -------------
    pred_bytes = pred.dtype.itemsize
    if tgt_is_index:
        tgt_px_bytes = 4                       # int32 indices streamed per pixel
        min_itemsize = min(pred_bytes, 4)
    else:
        tgt_px_bytes = C * target.dtype.itemsize
        min_itemsize = min(pred_bytes, target.dtype.itemsize, 4)
    # per-pixel VMEM: double-buffered inputs + allowance for f32 intermediates
    per_px_vmem = 2 * (C * pred_bytes + tgt_px_bytes) + 4 * _INTERMEDIATE_SLABS

    vmem_cap = _vmem_capacity_bytes()
    budget = min(int(vmem_cap * 0.55), 44 << 20)
    max_px = max(1024, (budget // per_px_vmem) // 128 * 128)
    if tile_px_target is None:
        tile_px_target = _DEFAULT_TILE_PX_CAP
    tile_px = int(max(1024, min(tile_px_target, max_px)))

    sub_align = max(8, 32 // max(1, min_itemsize))       # 8 (f32) / 16 (bf16) / 32 (i8)
    target_sub = max(sub_align, tile_px // 128)

    # ---- pixel-axis blocking -----------------------------------------------------
    n_sub = -(-HW // 128)                                # 128-lane rows per sample
    if split is None:
        # keep both v7x TensorCores busy when the batch alone can't be split evenly
        split = 2 if (N % 2 == 1 and n_sub > target_sub) else 1
    split = max(1, int(split))

    k = max(-(-n_sub // target_sub), split)              # pixel blocks per sample
    if k % split:
        k += split - (k % split)
    if k == 1:
        tile_sub = n_sub                                 # single full-extent block
    else:
        tile_sub = -(-(-(-n_sub // k)) // sub_align) * sub_align
    n_sub_pad = k * tile_sub
    pt_per_split = k // split
    tile_px = tile_sub * 128

    vmem_needed = per_px_vmem * tile_px + (4 << 20)
    vmem_limit = int(min(max(vmem_needed, 32 << 20),
                         max(vmem_cap - (8 << 20), 32 << 20)))

    # ---- dense pixel layout: (N, C, n_sub_pad, 128) -------------------------------
    # metadata-only when H*W already matches the block grid; otherwise one zero-pad
    # copy (padded target pixels contribute exactly zero and are masked for focal/suma).
    pad_px = n_sub_pad * 128 - HW
    pred3 = pred.reshape(N, C, HW)
    if pad_px:
        pred3 = jnp.pad(pred3, ((0, 0), (0, 0), (0, pad_px)))
    pred4 = pred3.reshape(N, C, n_sub_pad, 128)

    if tgt_is_index:
        tgt2 = target.reshape(N, HW)
        if tgt2.dtype != jnp.int32:
            tgt2 = tgt2.astype(jnp.int32)
        if pad_px:
            tgt2 = jnp.pad(tgt2, ((0, 0), (0, pad_px)), constant_values=C)
        tgt_in = tgt2.reshape(N, n_sub_pad, 128)
        tgt_spec = pl.BlockSpec((None, tile_sub, 128),
                                lambda n, s, i: (n, s * pt_per_split + i, 0))
    else:
        tgt3 = target.reshape(N, C, HW)
        if pad_px:
            tgt3 = jnp.pad(tgt3, ((0, 0), (0, 0), (0, pad_px)))
        tgt_in = tgt3.reshape(N, C, n_sub_pad, 128)
        tgt_spec = pl.BlockSpec((None, C, tile_sub, 128),
                                lambda n, s, i: (n, 0, s * pt_per_split + i, 0))

    pred_spec = pl.BlockSpec((None, C, tile_sub, 128),
                             lambda n, s, i: (n, 0, s * pt_per_split + i, 0))
    out_map = lambda n, s, i: (n * split + s, 0, 0)

    kernel = functools.partial(
        _focal_dice_kernel, float(gamma), tuple(float(a) for a in alpha),
        HW, n_sub_pad, tile_sub, pt_per_split, tgt_is_index)

    out_shapes = (
        jax.ShapeDtypeStruct((N * split, 1, 128), jnp.float32),   # focal lane partials
        jax.ShapeDtypeStruct((N * split, C, 128), jnp.float32),   # sum(softmax * target)
        jax.ShapeDtypeStruct((N * split, C, 128), jnp.float32),   # sum(softmax)
        jax.ShapeDtypeStruct((N * split, C, 128), jnp.float32),   # sum(target)
    )

    focal_p, inter_p, suma_p, sumb_p = pl.pallas_call(
        kernel,
        out_shape=out_shapes,
        grid_spec=pltpu.PrefetchScalarGridSpec(
            num_scalar_prefetch=0,
            grid=(N, split, pt_per_split),
            in_specs=[pred_spec, tgt_spec],
            out_specs=[
                pl.BlockSpec((None, 1, 128), out_map),
                pl.BlockSpec((None, C, 128), out_map),
                pl.BlockSpec((None, C, 128), out_map),
                pl.BlockSpec((None, C, 128), out_map),
            ],
        ),
        compiler_params=pltpu.CompilerParams(
            dimension_semantics=("parallel", "parallel", "arbitrary"),
            vmem_limit_bytes=vmem_limit),
    )(pred4, tgt_in)

    # ---- tiny cross-(sample, split, lane) collapse in the wrapper -----------------
    focal_sum = jnp.sum(focal_p)
    inter = jnp.sum(inter_p, axis=(0, 2))
    suma = jnp.sum(suma_p, axis=(0, 2))
    sumb = jnp.sum(sumb_p, axis=(0, 2))

    if reduction == 'mean':
        focal = focal_sum / (N * HW)
    elif reduction == 'sum':
        focal = focal_sum
    else:
        # TODO(synk): reduction='none' would need the per-pixel focal map as an output.
        raise ValueError("only 'mean'/'sum' reductions are supported")

    # DiceLoss(mode='batch'): foreground classes 1..C-1
    dice = jnp.float32(0.0)
    for c in range(1, C):
        union = suma[c] + sumb[c]
        score = jnp.where(union == 0,
                          jnp.float32(1.0),
                          (2.0 * inter[c] + smooth) / (union + smooth))
        dice = dice + (1.0 - score)

    return s1 * focal + s2 * dice


def _ref_focal_dice(pred, target, alpha=(0.25, 0.8, 0.8, 0.8), gamma=2.0,
                    s1=1.0, s2=1.0, smooth=1e-5):
    """Plain-JAX reference mirroring the PyTorch module."""
    pred = pred.astype(jnp.float32)
    target = target.astype(jnp.float32)
    z = pred - jnp.max(pred, axis=1, keepdims=True)
    e = jnp.exp(z)
    denom = jnp.sum(e, axis=1, keepdims=True)
    sm = e / denom
    logsm = z - jnp.log(denom)
    alpha_arr = jnp.asarray(alpha, jnp.float32)
    tidx = jnp.argmax(target, axis=1)
    alpha_t = alpha_arr[tidx]
    logp_t = jnp.take_along_axis(logsm, tidx[:, None], axis=1)[:, 0]
    ce = -alpha_t * logp_t
    pt = jnp.sum(sm * target, axis=1)
    focal = jnp.mean((1.0 - pt) ** gamma * ce)
    C = pred.shape[1]
    dice = 0.0
    for i in range(1, C):
        a = sm[:, i].reshape(-1)
        b = target[:, i].reshape(-1)
        inter = jnp.sum(a * b)
        union = jnp.sum(a) + jnp.sum(b)
        score = jnp.where(union == 0, 1.0, (2.0 * inter + smooth) / (union + smooth))
        dice = dice + (1.0 - score)
    return s1 * focal + s2 * dice


def _make_inputs(key, N, C, H, W):
    k1, k2 = jax.random.split(key)
    pred = jax.random.normal(k1, (N, C, H, W), jnp.float32)          # logits, NCHW
    labels = jax.random.randint(k2, (N, H, W), 0, C)                 # class indices
    target = jax.nn.one_hot(labels, C, dtype=jnp.float32)            # (N, H, W, C)
    target = jnp.transpose(target, (0, 3, 1, 2))                     # one-hot, NCHW
    return pred, target, labels


if __name__ == "__main__":
    key = jax.random.PRNGKey(0)
    k1, k2, k3 = jax.random.split(key, 3)

    def _check(name, out, ref):
        out = float(out)
        ref = float(ref)
        assert out == out, f"{name}: non-finite loss"
        assert abs(out - ref) < 1e-3 * max(1.0, abs(ref)), \
            f"{name}: mismatch kernel={out} ref={ref}"

    # 1) lane-aligned spatial size, default tiling (single pixel block per sample).
    pred1, target1, _ = _make_inputs(k1, 2, 4, 16, 16)
    out1 = jax.block_until_ready(focal_dice_loss(pred1, target1))
    _check("aligned", out1, _ref_focal_dice(pred1, target1))

    # 2) spatial size not a multiple of the block -> wrapper pad + in-kernel masking,
    #    small forced tile so several pixel blocks per sample are exercised.
    pred2, target2, labels2 = _make_inputs(k2, 2, 4, 40, 40)
    ref2 = _ref_focal_dice(pred2, target2)
    out2 = jax.block_until_ready(focal_dice_loss(pred2, target2, tile_px_target=1024))
    _check("masked-onehot", out2, ref2)

    # 3) integer class-index target fast path (exact for one-hot targets).
    out3 = jax.block_until_ready(focal_dice_loss(pred2, labels2, tile_px_target=1024))
    _check("masked-index", out3, ref2)

    # 4) odd batch -> pixel-range split axis (keeps the second v7x TensorCore busy).
    pred4, target4, _ = _make_inputs(k3, 1, 4, 48, 48)
    out4 = jax.block_until_ready(
        focal_dice_loss(pred4, target4, tile_px_target=1024, split=2))
    _check("split", out4, _ref_focal_dice(pred4, target4))

    print("KERNEL_OK")
</pallas_src>

<mosaic_0001>
module attributes {stable_mosaic.version = 11 : i64} {
  func.func @_focal_dice_kernel(%arg0: i32, %arg1: i32, %arg2: i32, %arg3: memref<1x4x2x128xf32, #tpu.memory_space<vmem>>, %arg4: memref<1x4x2x128xf32, #tpu.memory_space<vmem>>, %arg5: memref<1x1x128xf32, #tpu.memory_space<vmem>>, %arg6: memref<1x4x128xf32, #tpu.memory_space<vmem>>, %arg7: memref<1x4x128xf32, #tpu.memory_space<vmem>>, %arg8: memref<1x4x128xf32, #tpu.memory_space<vmem>>) attributes {dimension_semantics = [#tpu.dimension_semantics<parallel>, #tpu.dimension_semantics<parallel>, #tpu.dimension_semantics<arbitrary>], iteration_bounds = array<i64: 2, 1, 1>, scalar_prefetch = 0 : i64, scratch_operands = 0 : i64, tpu.core_type = #tpu.core_type<tc>, window_params = [{transform_indices = @transform_0, window_bounds = array<i64: 1, 4, 2, 128>}, {transform_indices = @transform_1, window_bounds = array<i64: 1, 4, 2, 128>}, {transform_indices = @transform_2, window_bounds = array<i64: 1, 1, 128>}, {transform_indices = @transform_3, window_bounds = array<i64: 1, 4, 128>}, {transform_indices = @transform_4, window_bounds = array<i64: 1, 4, 128>}, {transform_indices = @transform_5, window_bounds = array<i64: 1, 4, 128>}]} {
    %c0_i32 = arith.constant 0 : i32
    %0 = arith.cmpi eq, %arg2, %c0_i32 : i32
    %1 = arith.extui %0 : i1 to i32
    %c0_i32_0 = arith.constant 0 : i32
    %2 = arith.cmpi ne, %1, %c0_i32_0 : i32
    scf.if %2 {
      %cst_132 = arith.constant 0.000000e+00 : f32
      %195 = vector.broadcast %cst_132 : f32 to vector<1x128xf32>
      %c0_133 = arith.constant 0 : index
      %c0_134 = arith.constant 0 : index
      %c0_135 = arith.constant 0 : index
      %196 = vector.load %arg5[%c0_133, %c0_134, %c0_135] : memref<1x1x128xf32, #tpu.memory_space<vmem>>, vector<1x1x128xf32>
      %197 = vector.shape_cast %196 : vector<1x1x128xf32> to vector<1x128xf32>
      %198 = vector.shape_cast %195 : vector<1x128xf32> to vector<1x1x128xf32>
      tpu.vector_store %arg5[%c0_133, %c0_134, %c0_135], %198 {strides = array<i32>} : memref<1x1x128xf32, #tpu.memory_space<vmem>>, vector<1x1x128xf32>,
      %cst_136 = arith.constant 0.000000e+00 : f32
      %199 = vector.broadcast %cst_136 : f32 to vector<4x128xf32>
      %c0_137 = arith.constant 0 : index
      %c0_138 = arith.constant 0 : index
      %c0_139 = arith.constant 0 : index
      %200 = vector.load %arg6[%c0_137, %c0_138, %c0_139] : memref<1x4x128xf32, #tpu.memory_space<vmem>>, vector<1x4x128xf32>
      %201 = vector.shape_cast %200 : vector<1x4x128xf32> to vector<4x128xf32>
      %202 = vector.shape_cast %199 : vector<4x128xf32> to vector<1x4x128xf32>
      tpu.vector_store %arg6[%c0_137, %c0_138, %c0_139], %202 {strides = array<i32>} : memref<1x4x128xf32, #tpu.memory_space<vmem>>, vector<1x4x128xf32>,
      %cst_140 = arith.constant 0.000000e+00 : f32
      %203 = vector.broadcast %cst_140 : f32 to vector<4x128xf32>
      %c0_141 = arith.constant 0 : index
      %c0_142 = arith.constant 0 : index
      %c0_143 = arith.constant 0 : index
      %204 = vector.load %arg7[%c0_141, %c0_142, %c0_143] : memref<1x4x128xf32, #tpu.memory_space<vmem>>, vector<1x4x128xf32>
      %205 = vector.shape_cast %204 : vector<1x4x128xf32> to vector<4x128xf32>
      %206 = vector.shape_cast %203 : vector<4x128xf32> to vector<1x4x128xf32>
      tpu.vector_store %arg7[%c0_141, %c0_142, %c0_143], %206 {strides = array<i32>} : memref<1x4x128xf32, #tpu.memory_space<vmem>>, vector<1x4x128xf32>,
      %cst_144 = arith.constant 0.000000e+00 : f32
      %207 = vector.broadcast %cst_144 : f32 to vector<4x128xf32>
      %c0_145 = arith.constant 0 : index
      %c0_146 = arith.constant 0 : index
      %c0_147 = arith.constant 0 : index
      %208 = vector.load %arg8[%c0_145, %c0_146, %c0_147] : memref<1x4x128xf32, #tpu.memory_space<vmem>>, vector<1x4x128xf32>
      %209 = vector.shape_cast %208 : vector<1x4x128xf32> to vector<4x128xf32>
      %210 = vector.shape_cast %207 : vector<4x128xf32> to vector<1x4x128xf32>
      tpu.vector_store %arg8[%c0_145, %c0_146, %c0_147], %210 {strides = array<i32>} : memref<1x4x128xf32, #tpu.memory_space<vmem>>, vector<1x4x128xf32>,
    } else {
    }
    %c0 = arith.constant 0 : index
    %c0_1 = arith.constant 0 : index
    %c0_2 = arith.constant 0 : index
    %c0_3 = arith.constant 0 : index
    %3 = vector.load %arg3[%c0, %c0_1, %c0_2, %c0_3] : memref<1x4x2x128xf32, #tpu.memory_space<vmem>>, vector<1x1x2x128xf32>
    %4 = vector.shape_cast %3 : vector<1x1x2x128xf32> to vector<2x128xf32>
    %c0_4 = arith.constant 0 : index
    %c1 = arith.constant 1 : index
    %c0_5 = arith.constant 0 : index
    %c0_6 = arith.constant 0 : index
    %5 = vector.load %arg3[%c0_4, %c1, %c0_5, %c0_6] : memref<1x4x2x128xf32, #tpu.memory_space<vmem>>, vector<1x1x2x128xf32>
    %6 = vector.shape_cast %5 : vector<1x1x2x128xf32> to vector<2x128xf32>
    %c0_7 = arith.constant 0 : index
    %c2 = arith.constant 2 : index
    %c0_8 = arith.constant 0 : index
    %c0_9 = arith.constant 0 : index
    %7 = vector.load %arg3[%c0_7, %c2, %c0_8, %c0_9] : memref<1x4x2x128xf32, #tpu.memory_space<vmem>>, vector<1x1x2x128xf32>
    %8 = vector.shape_cast %7 : vector<1x1x2x128xf32> to vector<2x128xf32>
    %c0_10 = arith.constant 0 : index
    %c3 = arith.constant 3 : index
    %c0_11 = arith.constant 0 : index
    %c0_12 = arith.constant 0 : index
    %9 = vector.load %arg3[%c0_10, %c3, %c0_11, %c0_12] : memref<1x4x2x128xf32, #tpu.memory_space<vmem>>, vector<1x1x2x128xf32>
    %10 = vector.shape_cast %9 : vector<1x1x2x128xf32> to vector<2x128xf32>
    %c0_13 = arith.constant 0 : index
    %c0_14 = arith.constant 0 : index
    %c0_15 = arith.constant 0 : index
    %c0_16 = arith.constant 0 : index
    %11 = vector.load %arg4[%c0_13, %c0_14, %c0_15, %c0_16] : memref<1x4x2x128xf32, #tpu.memory_space<vmem>>, vector<1x1x2x128xf32>
    %12 = vector.shape_cast %11 : vector<1x1x2x128xf32> to vector<2x128xf32>
    %c0_17 = arith.constant 0 : index
    %c1_18 = arith.constant 1 : index
    %c0_19 = arith.constant 0 : index
    %c0_20 = arith.constant 0 : index
    %13 = vector.load %arg4[%c0_17, %c1_18, %c0_19, %c0_20] : memref<1x4x2x128xf32, #tpu.memory_space<vmem>>, vector<1x1x2x128xf32>
    %14 = vector.shape_cast %13 : vector<1x1x2x128xf32> to vector<2x128xf32>
    %c0_21 = arith.constant 0 : index
    %c2_22 = arith.constant 2 : index
    %c0_23 = arith.constant 0 : index
    %c0_24 = arith.constant 0 : index
    %15 = vector.load %arg4[%c0_21, %c2_22, %c0_23, %c0_24] : memref<1x4x2x128xf32, #tpu.memory_space<vmem>>, vector<1x1x2x128xf32>
    %16 = vector.shape_cast %15 : vector<1x1x2x128xf32> to vector<2x128xf32>
    %c0_25 = arith.constant 0 : index
    %c3_26 = arith.constant 3 : index
    %c0_27 = arith.constant 0 : index
    %c0_28 = arith.constant 0 : index
    %17 = vector.load %arg4[%c0_25, %c3_26, %c0_27, %c0_28] : memref<1x4x2x128xf32, #tpu.memory_space<vmem>>, vector<1x1x2x128xf32>
    %18 = vector.shape_cast %17 : vector<1x1x2x128xf32> to vector<2x128xf32>
    %19 = arith.maximumf %4, %6 : vector<2x128xf32>
    %20 = arith.maximumf %19, %8 : vector<2x128xf32>
    %21 = arith.maximumf %20, %10 : vector<2x128xf32>
    %22 = arith.subf %4, %21 : vector<2x128xf32>
    %23 = arith.subf %6, %21 : vector<2x128xf32>
    %24 = arith.subf %8, %21 : vector<2x128xf32>
    %25 = arith.subf %10, %21 : vector<2x128xf32>
    %26 = math.exp %22 : vector<2x128xf32>
    %27 = math.exp %23 : vector<2x128xf32>
    %28 = math.exp %24 : vector<2x128xf32>
    %29 = math.exp %25 : vector<2x128xf32>
    %30 = arith.addf %26, %27 : vector<2x128xf32>
    %31 = arith.addf %30, %28 : vector<2x128xf32>
    %32 = arith.addf %31, %29 : vector<2x128xf32>
    %33 = tpu.reciprocal %32 {approx = true} : vector<2x128xf32> -> vector<2x128xf32>
    %34 = arith.mulf %32, %33 : vector<2x128xf32>
    %cst = arith.constant 2.000000e+00 : f32
    %35 = vector.broadcast %cst : f32 to vector<2x128xf32>
    %36 = arith.subf %35, %34 : vector<2x128xf32>
    %37 = arith.mulf %33, %36 : vector<2x128xf32>
    %38 = arith.mulf %26, %37 : vector<2x128xf32>
    %39 = arith.mulf %27, %37 : vector<2x128xf32>
    %40 = arith.mulf %28, %37 : vector<2x128xf32>
    %41 = arith.mulf %29, %37 : vector<2x128xf32>
    %42 = math.log %32 : vector<2x128xf32>
    %43 = arith.maximumf %12, %14 : vector<2x128xf32>
    %44 = arith.maximumf %43, %16 : vector<2x128xf32>
    %45 = arith.maximumf %44, %18 : vector<2x128xf32>
    %false = arith.constant false
    %46 = vector.broadcast %false : i1 to vector<2x128xi1>
    %47 = arith.cmpf oeq, %12, %45 : vector<2x128xf32>
    %cst_29 = arith.constant dense<true> : vector<2x128xi1>
    %48 = arith.xori %46, %cst_29 : vector<2x128xi1>
    %49 = arith.andi %47, %48 : vector<2x128xi1>
    %50 = arith.ori %46, %47 : vector<2x128xi1>
    %51 = arith.cmpf oeq, %14, %45 : vector<2x128xf32>
    %cst_30 = arith.constant dense<true> : vector<2x128xi1>
    %52 = arith.xori %50, %cst_30 : vector<2x128xi1>
    %53 = arith.andi %51, %52 : vector<2x128xi1>
    %54 = arith.ori %50, %51 : vector<2x128xi1>
    %55 = arith.cmpf oeq, %16, %45 : vector<2x128xf32>
    %cst_31 = arith.constant dense<true> : vector<2x128xi1>
    %56 = arith.xori %54, %cst_31 : vector<2x128xi1>
    %57 = arith.andi %55, %56 : vector<2x128xi1>
    %58 = arith.ori %54, %55 : vector<2x128xi1>
    %59 = arith.cmpf oeq, %18, %45 : vector<2x128xf32>
    %cst_32 = arith.constant dense<true> : vector<2x128xi1>
    %60 = arith.xori %58, %cst_32 : vector<2x128xi1>
    %61 = arith.andi %59, %60 : vector<2x128xi1>
    %cst_33 = arith.constant 2.500000e-01 : f32
    %cst_34 = arith.constant 0.000000e+00 : f32
    %62 = vector.broadcast %cst_33 : f32 to vector<2x128xf32>
    %63 = vector.broadcast %cst_34 : f32 to vector<2x128xf32>
    %64 = arith.select %49, %62, %63 : vector<2x128xi1>, vector<2x128xf32>
    %cst_35 = arith.constant 0.000000e+00 : f32
    %65 = vector.broadcast %cst_35 : f32 to vector<2x128xf32>
    %66 = arith.select %49, %22, %65 : vector<2x128xi1>, vector<2x128xf32>
    %cst_36 = arith.constant 8.000000e-01 : f32
    %67 = vector.broadcast %cst_36 : f32 to vector<2x128xf32>
    %68 = arith.select %53, %67, %64 : vector<2x128xi1>, vector<2x128xf32>
    %69 = arith.select %53, %23, %66 : vector<2x128xi1>, vector<2x128xf32>
    %cst_37 = arith.constant 8.000000e-01 : f32
    %70 = vector.broadcast %cst_37 : f32 to vector<2x128xf32>
    %71 = arith.select %57, %70, %68 : vector<2x128xi1>, vector<2x128xf32>
    %72 = arith.select %57, %24, %69 : vector<2x128xi1>, vector<2x128xf32>
    %cst_38 = arith.constant 8.000000e-01 : f32
    %73 = vector.broadcast %cst_38 : f32 to vector<2x128xf32>
    %74 = arith.select %61, %73, %71 : vector<2x128xi1>, vector<2x128xf32>
    %75 = arith.select %61, %25, %72 : vector<2x128xi1>, vector<2x128xf32>
    %cst_39 = arith.constant 0.000000e+00 : f32
    %76 = vector.broadcast %cst_39 : f32 to vector<2x128xf32>
    %77 = arith.subf %76, %74 : vector<2x128xf32>
    %78 = arith.subf %75, %42 : vector<2x128xf32>
    %79 = arith.mulf %77, %78 : vector<2x128xf32>
    %80 = arith.mulf %38, %12 : vector<2x128xf32>
    %81 = arith.mulf %39, %14 : vector<2x128xf32>
    %82 = arith.mulf %40, %16 : vector<2x128xf32>
    %83 = arith.mulf %41, %18 : vector<2x128xf32>
    %84 = arith.addf %80, %81 : vector<2x128xf32>
    %85 = arith.addf %84, %82 : vector<2x128xf32>
    %86 = arith.addf %85, %83 : vector<2x128xf32>
    %cst_40 = arith.constant 1.000000e+00 : f32
    %87 = vector.broadcast %cst_40 : f32 to vector<2x128xf32>
    %88 = arith.subf %87, %86 : vector<2x128xf32>
    %89 = arith.mulf %88, %88 : vector<2x128xf32>
    %90 = arith.mulf %89, %79 : vector<2x128xf32>
    %c0_41 = arith.constant 0 : index
    %c0_42 = arith.constant 0 : index
    %c0_43 = arith.constant 0 : index
    %91 = vector.load %arg6[%c0_41, %c0_42, %c0_43] : memref<1x4x128xf32, #tpu.memory_space<vmem>>, vector<1x1x128xf32>
    %92 = vector.shape_cast %91 : vector<1x1x128xf32> to vector<1x128xf32>
    %cst_44 = arith.constant dense<0.000000e+00> : vector<128xf32>
    %93 = vector.multi_reduction <add>, %80, %cst_44 [0] : vector<2x128xf32> to vector<128xf32>
    %94 = vector.shape_cast %93 : vector<128xf32> to vector<1x128xf32>
    %95 = arith.addf %92, %94 : vector<1x128xf32>
    %c0_45 = arith.constant 0 : index
    %c0_46 = arith.constant 0 : index
    %c0_47 = arith.constant 0 : index
    %96 = vector.load %arg6[%c0_45, %c0_46, %c0_47] : memref<1x4x128xf32, #tpu.memory_space<vmem>>, vector<1x1x128xf32>
    %97 = vector.shape_cast %96 : vector<1x1x128xf32> to vector<1x128xf32>
    %98 = vector.shape_cast %95 : vector<1x128xf32> to vector<1x1x128xf32>
    tpu.vector_store %arg6[%c0_45, %c0_46, %c0_47], %98 {strides = array<i32>} : memref<1x4x128xf32, #tpu.memory_space<vmem>>, vector<1x1x128xf32>,
    %c0_48 = arith.constant 0 : index
    %c0_49 = arith.constant 0 : index
    %c0_50 = arith.constant 0 : index
    %99 = vector.load %arg8[%c0_48, %c0_49, %c0_50] : memref<1x4x128xf32, #tpu.memory_space<vmem>>, vector<1x1x128xf32>
    %100 = vector.shape_cast %99 : vector<1x1x128xf32> to vector<1x128xf32>
    %cst_51 = arith.constant dense<0.000000e+00> : vector<128xf32>
    %101 = vector.multi_reduction <add>, %12, %cst_51 [0] : vector<2x128xf32> to vector<128xf32>
    %102 = vector.shape_cast %101 : vector<128xf32> to vector<1x128xf32>
    %103 = arith.addf %100, %102 : vector<1x128xf32>
    %c0_52 = arith.constant 0 : index
    %c0_53 = arith.constant 0 : index
    %c0_54 = arith.constant 0 : index
    %104 = vector.load %arg8[%c0_52, %c0_53, %c0_54] : memref<1x4x128xf32, #tpu.memory_space<vmem>>, vector<1x1x128xf32>
    %105 = vector.shape_cast %104 : vector<1x1x128xf32> to vector<1x128xf32>
    %106 = vector.shape_cast %103 : vector<1x128xf32> to vector<1x1x128xf32>
    tpu.vector_store %arg8[%c0_52, %c0_53, %c0_54], %106 {strides = array<i32>} : memref<1x4x128xf32, #tpu.memory_space<vmem>>, vector<1x1x128xf32>,
    %c0_55 = arith.constant 0 : index
    %c1_56 = arith.constant 1 : index
    %c0_57 = arith.constant 0 : index
    %107 = vector.load %arg6[%c0_55, %c1_56, %c0_57] : memref<1x4x128xf32, #tpu.memory_space<vmem>>, vector<1x1x128xf32>
    %108 = vector.shape_cast %107 : vector<1x1x128xf32> to vector<1x128xf32>
    %cst_58 = arith.constant dense<0.000000e+00> : vector<128xf32>
    %109 = vector.multi_reduction <add>, %81, %cst_58 [0] : vector<2x128xf32> to vector<128xf32>
    %110 = vector.shape_cast %109 : vector<128xf32> to vector<1x128xf32>
    %111 = arith.addf %108, %110 : vector<1x128xf32>
    %c0_59 = arith.constant 0 : index
    %c1_60 = arith.constant 1 : index
    %c0_61 = arith.constant 0 : index
    %112 = vector.load %arg6[%c0_59, %c1_60, %c0_61] : memref<1x4x128xf32, #tpu.memory_space<vmem>>, vector<1x1x128xf32>
    %113 = vector.shape_cast %112 : vector<1x1x128xf32> to vector<1x128xf32>
    %114 = vector.shape_cast %111 : vector<1x128xf32> to vector<1x1x128xf32>
    tpu.vector_store %arg6[%c0_59, %c1_60, %c0_61], %114 {strides = array<i32>} : memref<1x4x128xf32, #tpu.memory_space<vmem>>, vector<1x1x128xf32>,
    %c0_62 = arith.constant 0 : index
    %c1_63 = arith.constant 1 : index
    %c0_64 = arith.constant 0 : index
    %115 = vector.load %arg8[%c0_62, %c1_63, %c0_64] : memref<1x4x128xf32, #tpu.memory_space<vmem>>, vector<1x1x128xf32>
    %116 = vector.shape_cast %115 : vector<1x1x128xf32> to vector<1x128xf32>
    %cst_65 = arith.constant dense<0.000000e+00> : vector<128xf32>
    %117 = vector.multi_reduction <add>, %14, %cst_65 [0] : vector<2x128xf32> to vector<128xf32>
    %118 = vector.shape_cast %117 : vector<128xf32> to vector<1x128xf32>
    %119 = arith.addf %116, %118 : vector<1x128xf32>
    %c0_66 = arith.constant 0 : index
    %c1_67 = arith.constant 1 : index
    %c0_68 = arith.constant 0 : index
    %120 = vector.load %arg8[%c0_66, %c1_67, %c0_68] : memref<1x4x128xf32, #tpu.memory_space<vmem>>, vector<1x1x128xf32>
    %121 = vector.shape_cast %120 : vector<1x1x128xf32> to vector<1x128xf32>
    %122 = vector.shape_cast %119 : vector<1x128xf32> to vector<1x1x128xf32>
    tpu.vector_store %arg8[%c0_66, %c1_67, %c0_68], %122 {strides = array<i32>} : memref<1x4x128xf32, #tpu.memory_space<vmem>>, vector<1x1x128xf32>,
    %c0_69 = arith.constant 0 : index
    %c2_70 = arith.constant 2 : index
    %c0_71 = arith.constant 0 : index
    %123 = vector.load %arg6[%c0_69, %c2_70, %c0_71] : memref<1x4x128xf32, #tpu.memory_space<vmem>>, vector<1x1x128xf32>
    %124 = vector.shape_cast %123 : vector<1x1x128xf32> to vector<1x128xf32>
    %cst_72 = arith.constant dense<0.000000e+00> : vector<128xf32>
    %125 = vector.multi_reduction <add>, %82, %cst_72 [0] : vector<2x128xf32> to vector<128xf32>
    %126 = vector.shape_cast %125 : vector<128xf32> to vector<1x128xf32>
    %127 = arith.addf %124, %126 : vector<1x128xf32>
    %c0_73 = arith.constant 0 : index
    %c2_74 = arith.constant 2 : index
    %c0_75 = arith.constant 0 : index
    %128 = vector.load %arg6[%c0_73, %c2_74, %c0_75] : memref<1x4x128xf32, #tpu.memory_space<vmem>>, vector<1x1x128xf32>
    %129 = vector.shape_cast %128 : vector<1x1x128xf32> to vector<1x128xf32>
    %130 = vector.shape_cast %127 : vector<1x128xf32> to vector<1x1x128xf32>
    tpu.vector_store %arg6[%c0_73, %c2_74, %c0_75], %130 {strides = array<i32>} : memref<1x4x128xf32, #tpu.memory_space<vmem>>, vector<1x1x128xf32>,
    %c0_76 = arith.constant 0 : index
    %c2_77 = arith.constant 2 : index
    %c0_78 = arith.constant 0 : index
    %131 = vector.load %arg8[%c0_76, %c2_77, %c0_78] : memref<1x4x128xf32, #tpu.memory_space<vmem>>, vector<1x1x128xf32>
    %132 = vector.shape_cast %131 : vector<1x1x128xf32> to vector<1x128xf32>
    %cst_79 = arith.constant dense<0.000000e+00> : vector<128xf32>
    %133 = vector.multi_reduction <add>, %16, %cst_79 [0] : vector<2x128xf32> to vector<128xf32>
    %134 = vector.shape_cast %133 : vector<128xf32> to vector<1x128xf32>
    %135 = arith.addf %132, %134 : vector<1x128xf32>
    %c0_80 = arith.constant 0 : index
    %c2_81 = arith.constant 2 : index
    %c0_82 = arith.constant 0 : index
    %136 = vector.load %arg8[%c0_80, %c2_81, %c0_82] : memref<1x4x128xf32, #tpu.memory_space<vmem>>, vector<1x1x128xf32>
    %137 = vector.shape_cast %136 : vector<1x1x128xf32> to vector<1x128xf32>
    %138 = vector.shape_cast %135 : vector<1x128xf32> to vector<1x1x128xf32>
    tpu.vector_store %arg8[%c0_80, %c2_81, %c0_82], %138 {strides = array<i32>} : memref<1x4x128xf32, #tpu.memory_space<vmem>>, vector<1x1x128xf32>,
    %c0_83 = arith.constant 0 : index
    %c3_84 = arith.constant 3 : index
    %c0_85 = arith.constant 0 : index
    %139 = vector.load %arg6[%c0_83, %c3_84, %c0_85] : memref<1x4x128xf32, #tpu.memory_space<vmem>>, vector<1x1x128xf32>
    %140 = vector.shape_cast %139 : vector<1x1x128xf32> to vector<1x128xf32>
    %cst_86 = arith.constant dense<0.000000e+00> : vector<128xf32>
    %141 = vector.multi_reduction <add>, %83, %cst_86 [0] : vector<2x128xf32> to vector<128xf32>
    %142 = vector.shape_cast %141 : vector<128xf32> to vector<1x128xf32>
    %143 = arith.addf %140, %142 : vector<1x128xf32>
    %c0_87 = arith.constant 0 : index
    %c3_88 = arith.constant 3 : index
    %c0_89 = arith.constant 0 : index
    %144 = vector.load %arg6[%c0_87, %c3_88, %c0_89] : memref<1x4x128xf32, #tpu.memory_space<vmem>>, vector<1x1x128xf32>
    %145 = vector.shape_cast %144 : vector<1x1x128xf32> to vector<1x128xf32>
    %146 = vector.shape_cast %143 : vector<1x128xf32> to vector<1x1x128xf32>
    tpu.vector_store %arg6[%c0_87, %c3_88, %c0_89], %146 {strides = array<i32>} : memref<1x4x128xf32, #tpu.memory_space<vmem>>, vector<1x1x128xf32>,
    %c0_90 = arith.constant 0 : index
    %c3_91 = arith.constant 3 : index
    %c0_92 = arith.constant 0 : index
    %147 = vector.load %arg8[%c0_90, %c3_91, %c0_92] : memref<1x4x128xf32, #tpu.memory_space<vmem>>, vector<1x1x128xf32>
    %148 = vector.shape_cast %147 : vector<1x1x128xf32> to vector<1x128xf32>
    %cst_93 = arith.constant dense<0.000000e+00> : vector<128xf32>
    %149 = vector.multi_reduction <add>, %18, %cst_93 [0] : vector<2x128xf32> to vector<128xf32>
    %150 = vector.shape_cast %149 : vector<128xf32> to vector<1x128xf32>
    %151 = arith.addf %148, %150 : vector<1x128xf32>
    %c0_94 = arith.constant 0 : index
    %c3_95 = arith.constant 3 : index
    %c0_96 = arith.constant 0 : index
    %152 = vector.load %arg8[%c0_94, %c3_95, %c0_96] : memref<1x4x128xf32, #tpu.memory_space<vmem>>, vector<1x1x128xf32>
    %153 = vector.shape_cast %152 : vector<1x1x128xf32> to vector<1x128xf32>
    %154 = vector.shape_cast %151 : vector<1x128xf32> to vector<1x1x128xf32>
    tpu.vector_store %arg8[%c0_94, %c3_95, %c0_96], %154 {strides = array<i32>} : memref<1x4x128xf32, #tpu.memory_space<vmem>>, vector<1x1x128xf32>,
    %c0_97 = arith.constant 0 : index
    %c0_98 = arith.constant 0 : index
    %c0_99 = arith.constant 0 : index
    %155 = vector.load %arg5[%c0_97, %c0_98, %c0_99] : memref<1x1x128xf32, #tpu.memory_space<vmem>>, vector<1x1x128xf32>
    %156 = vector.shape_cast %155 : vector<1x1x128xf32> to vector<1x128xf32>
    %cst_100 = arith.constant dense<0.000000e+00> : vector<128xf32>
    %157 = vector.multi_reduction <add>, %90, %cst_100 [0] : vector<2x128xf32> to vector<128xf32>
    %158 = vector.shape_cast %157 : vector<128xf32> to vector<1x128xf32>
    %159 = arith.addf %156, %158 : vector<1x128xf32>
    %c0_101 = arith.constant 0 : index
    %c0_102 = arith.constant 0 : index
    %c0_103 = arith.constant 0 : index
    %160 = vector.load %arg5[%c0_101, %c0_102, %c0_103] : memref<1x1x128xf32, #tpu.memory_space<vmem>>, vector<1x1x128xf32>
    %161 = vector.shape_cast %160 : vector<1x1x128xf32> to vector<1x128xf32>
    %162 = vector.shape_cast %159 : vector<1x128xf32> to vector<1x1x128xf32>
    tpu.vector_store %arg5[%c0_101, %c0_102, %c0_103], %162 {strides = array<i32>} : memref<1x1x128xf32, #tpu.memory_space<vmem>>, vector<1x1x128xf32>,
    %c0_104 = arith.constant 0 : index
    %c0_105 = arith.constant 0 : index
    %c0_106 = arith.constant 0 : index
    %163 = vector.load %arg7[%c0_104, %c0_105, %c0_106] : memref<1x4x128xf32, #tpu.memory_space<vmem>>, vector<1x1x128xf32>
    %164 = vector.shape_cast %163 : vector<1x1x128xf32> to vector<1x128xf32>
    %cst_107 = arith.constant dense<0.000000e+00> : vector<128xf32>
    %165 = vector.multi_reduction <add>, %38, %cst_107 [0] : vector<2x128xf32> to vector<128xf32>
    %166 = vector.shape_cast %165 : vector<128xf32> to vector<1x128xf32>
    %167 = arith.addf %164, %166 : vector<1x128xf32>
    %c0_108 = arith.constant 0 : index
    %c0_109 = arith.constant 0 : index
    %c0_110 = arith.constant 0 : index
    %168 = vector.load %arg7[%c0_108, %c0_109, %c0_110] : memref<1x4x128xf32, #tpu.memory_space<vmem>>, vector<1x1x128xf32>
    %169 = vector.shape_cast %168 : vector<1x1x128xf32> to vector<1x128xf32>
    %170 = vector.shape_cast %167 : vector<1x128xf32> to vector<1x1x128xf32>
    tpu.vector_store %arg7[%c0_108, %c0_109, %c0_110], %170 {strides = array<i32>} : memref<1x4x128xf32, #tpu.memory_space<vmem>>, vector<1x1x128xf32>,
    %c0_111 = arith.constant 0 : index
    %c1_112 = arith.constant 1 : index
    %c0_113 = arith.constant 0 : index
    %171 = vector.load %arg7[%c0_111, %c1_112, %c0_113] : memref<1x4x128xf32, #tpu.memory_space<vmem>>, vector<1x1x128xf32>
    %172 = vector.shape_cast %171 : vector<1x1x128xf32> to vector<1x128xf32>
    %cst_114 = arith.constant dense<0.000000e+00> : vector<128xf32>
    %173 = vector.multi_reduction <add>, %39, %cst_114 [0] : vector<2x128xf32> to vector<128xf32>
    %174 = vector.shape_cast %173 : vector<128xf32> to vector<1x128xf32>
    %175 = arith.addf %172, %174 : vector<1x128xf32>
    %c0_115 = arith.constant 0 : index
    %c1_116 = arith.constant 1 : index
    %c0_117 = arith.constant 0 : index
    %176 = vector.load %arg7[%c0_115, %c1_116, %c0_117] : memref<1x4x128xf32, #tpu.memory_space<vmem>>, vector<1x1x128xf32>
    %177 = vector.shape_cast %176 : vector<1x1x128xf32> to vector<1x128xf32>
    %178 = vector.shape_cast %175 : vector<1x128xf32> to vector<1x1x128xf32>
    tpu.vector_store %arg7[%c0_115, %c1_116, %c0_117], %178 {strides = array<i32>} : memref<1x4x128xf32, #tpu.memory_space<vmem>>, vector<1x1x128xf32>,
    %c0_118 = arith.constant 0 : index
    %c2_119 = arith.constant 2 : index
    %c0_120 = arith.constant 0 : index
    %179 = vector.load %arg7[%c0_118, %c2_119, %c0_120] : memref<1x4x128xf32, #tpu.memory_space<vmem>>, vector<1x1x128xf32>
    %180 = vector.shape_cast %179 : vector<1x1x128xf32> to vector<1x128xf32>
    %cst_121 = arith.constant dense<0.000000e+00> : vector<128xf32>
    %181 = vector.multi_reduction <add>, %40, %cst_121 [0] : vector<2x128xf32> to vector<128xf32>
    %182 = vector.shape_cast %181 : vector<128xf32> to vector<1x128xf32>
    %183 = arith.addf %180, %182 : vector<1x128xf32>
    %c0_122 = arith.constant 0 : index
    %c2_123 = arith.constant 2 : index
    %c0_124 = arith.constant 0 : index
    %184 = vector.load %arg7[%c0_122, %c2_123, %c0_124] : memref<1x4x128xf32, #tpu.memory_space<vmem>>, vector<1x1x128xf32>
    %185 = vector.shape_cast %184 : vector<1x1x128xf32> to vector<1x128xf32>
    %186 = vector.shape_cast %183 : vector<1x128xf32> to vector<1x1x128xf32>
    tpu.vector_store %arg7[%c0_122, %c2_123, %c0_124], %186 {strides = array<i32>} : memref<1x4x128xf32, #tpu.memory_space<vmem>>, vector<1x1x128xf32>,
    %c0_125 = arith.constant 0 : index
    %c3_126 = arith.constant 3 : index
    %c0_127 = arith.constant 0 : index
    %187 = vector.load %arg7[%c0_125, %c3_126, %c0_127] : memref<1x4x128xf32, #tpu.memory_space<vmem>>, vector<1x1x128xf32>
    %188 = vector.shape_cast %187 : vector<1x1x128xf32> to vector<1x128xf32>
    %cst_128 = arith.constant dense<0.000000e+00> : vector<128xf32>
    %189 = vector.multi_reduction <add>, %41, %cst_128 [0] : vector<2x128xf32> to vector<128xf32>
    %190 = vector.shape_cast %189 : vector<128xf32> to vector<1x128xf32>
    %191 = arith.addf %188, %190 : vector<1x128xf32>
    %c0_129 = arith.constant 0 : index
    %c3_130 = arith.constant 3 : index
    %c0_131 = arith.constant 0 : index
    %192 = vector.load %arg7[%c0_129, %c3_130, %c0_131] : memref<1x4x128xf32, #tpu.memory_space<vmem>>, vector<1x1x128xf32>
    %193 = vector.shape_cast %192 : vector<1x1x128xf32> to vector<1x128xf32>
    %194 = vector.shape_cast %191 : vector<1x128xf32> to vector<1x1x128xf32>
    tpu.vector_store %arg7[%c0_129, %c3_130, %c0_131], %194 {strides = array<i32>} : memref<1x4x128xf32, #tpu.memory_space<vmem>>, vector<1x1x128xf32>,
    return
  }
  func.func @transform_0(%arg0: i32, %arg1: i32, %arg2: i32) -> (i32, i32, i32, i32) {
    %c1_i32 = arith.constant 1 : i32
    %0 = arith.muli %arg1, %c1_i32 : i32
    %1 = arith.addi %0, %arg2 : i32
    %c0_i32 = arith.constant 0 : i32
    %c0_i32_0 = arith.constant 0 : i32
    %c0_i32_1 = arith.constant 0 : i32
    return %arg0, %c0_i32, %1, %c0_i32_0 : i32, i32, i32, i32
  }
  func.func @transform_1(%arg0: i32, %arg1: i32, %arg2: i32) -> (i32, i32, i32, i32) {
    %c1_i32 = arith.constant 1 : i32
    %0 = arith.muli %arg1, %c1_i32 : i32
    %1 = arith.addi %0, %arg2 : i32
    %c0_i32 = arith.constant 0 : i32
    %c0_i32_0 = arith.constant 0 : i32
    %c0_i32_1 = arith.constant 0 : i32
    return %arg0, %c0_i32, %1, %c0_i32_0 : i32, i32, i32, i32
  }
  func.func @transform_2(%arg0: i32, %arg1: i32, %arg2: i32) -> (i32, i32, i32) {
    %c1_i32 = arith.constant 1 : i32
    %0 = arith.muli %arg0, %c1_i32 : i32
    %1 = arith.addi %0, %arg1 : i32
    %c0_i32 = arith.constant 0 : i32
    %c0_i32_0 = arith.constant 0 : i32
    %c0_i32_1 = arith.constant 0 : i32
    return %1, %c0_i32, %c0_i32_0 : i32, i32, i32
  }
  func.func @transform_3(%arg0: i32, %arg1: i32, %arg2: i32) -> (i32, i32, i32) {
    %c1_i32 = arith.constant 1 : i32
    %0 = arith.muli %arg0, %c1_i32 : i32
    %1 = arith.addi %0, %arg1 : i32
    %c0_i32 = arith.constant 0 : i32
    %c0_i32_0 = arith.constant 0 : i32
    %c0_i32_1 = arith.constant 0 : i32
    return %1, %c0_i32, %c0_i32_0 : i32, i32, i32
  }
  func.func @transform_4(%arg0: i32, %arg1: i32, %arg2: i32) -> (i32, i32, i32) {
    %c1_i32 = arith.constant 1 : i32
    %0 = arith.muli %arg0, %c1_i32 : i32
    %1 = arith.addi %0, %arg1 : i32
    %c0_i32 = arith.constant 0 : i32
    %c0_i32_0 = arith.constant 0 : i32
    %c0_i32_1 = arith.constant 0 : i32
    return %1, %c0_i32, %c0_i32_0 : i32, i32, i32
  }
  func.func @transform_5(%arg0: i32, %arg1: i32, %arg2: i32) -> (i32, i32, i32) {
    %c1_i32 = arith.constant 1 : i32
    %0 = arith.muli %arg0, %c1_i32 : i32
    %1 = arith.addi %0, %arg1 : i32
    %c0_i32 = arith.constant 0 : i32
    %c0_i32_0 = arith.constant 0 : i32
    %c0_i32_1 = arith.constant 0 : i32
    return %1, %c0_i32, %c0_i32_0 : i32, i32, i32
  }
}

</mosaic_0001>

<llo_original>
// kernel: tpu_custom_call.1
$region0: #{tpu_custom_call.1}
  #allocation0 [shape = 'u32[]', space=smem, size = 0x4, offset = 0x4, fixed_abs, tag = 'smem constant byte address 0x4 - core index']
  #allocation1 [shape = 'u32[144,128]{1,0:T(1,128)}', space=vmem, size = 0x12000, scoped, tag = 'internal scratch']
  %s0 = inlined_call_operand.hbm [shape: f32[2,4,2,128], index: 0, kind: input, shape index: {}]
  %s1 = inlined_call_operand.hbm [shape: f32[2,4,2,128], index: 1, kind: input, shape index: {}]
  %s2 = inlined_call_operand.hbm [shape: f32[2,1,128], index: 2, kind: output, shape index: {0}]
  %s3 = inlined_call_operand.hbm [shape: f32[2,4,128], index: 3, kind: output, shape index: {1}]
  %s4 = inlined_call_operand.hbm [shape: f32[2,4,128], index: 4, kind: output, shape index: {2}]
  %s5 = inlined_call_operand.hbm [shape: f32[2,4,128], index: 5, kind: output, shape index: {3}]
  %6 = xla_tuple %s2, %s3, %s4, %s5
  %s7 = sld [smem:[#allocation0]]
  $region77: #{tpu_custom_call.1} parent=0
    _
  %s9 = ssub.s32 1, %s7
  %s10 = scalar_select 0, %s9, %s7
  $region1: #{tpu_custom_call.1} parent=0
    #allocation2 [shape = 'u8[8192]{0}', space=vmem, size = 0x2000, scoped, tag = 'input window, operand 0']
    #allocation3 [shape = 's32[2]{0}', space=sflag, size = 0x8, scoped, tag = 'scoped memory for tpu_custom_call.1']
    #allocation4 [shape = 's32[2]{0}', space=sflag, size = 0x8, scoped, tag = 'scoped memory for tpu_custom_call.1']
    #allocation5 [shape = 'u8[8192]{0}', space=vmem, size = 0x2000, scoped, tag = 'input window, operand 1']
    #allocation6 [shape = 's32[2]{0}', space=sflag, size = 0x8, scoped, tag = 'scoped memory for tpu_custom_call.1']
    #allocation7 [shape = 'u8[1024]{0}', space=vmem, size = 0x400, scoped, tag = 'output window, operand 0']
    #allocation8 [shape = 'u8[4096]{0}', space=vmem, size = 0x1000, scoped, tag = 'output window, operand 1']
    #allocation9 [shape = 's32[2]{0}', space=sflag, size = 0x8, scoped, tag = 'scoped memory for tpu_custom_call.1']
    #allocation10 [shape = 'u8[4096]{0}', space=vmem, size = 0x1000, scoped, tag = 'output window, operand 2']
    #allocation11 [shape = 'u8[4096]{0}', space=vmem, size = 0x1000, scoped, tag = 'output window, operand 3']
    #allocation12 [shape = 's32[2]{0}', space=sflag, size = 0x8, scoped, tag = 'scoped memory for tpu_custom_call.1']
    %11 = vsyncpa [#allocation3], 0
    %s12 = scalar_lea.sflag [#allocation3], 1
    %13 = vsyncpa %s12, 0
    %14 = vsyncpa [#allocation6], 0
    %s15 = scalar_lea.sflag [#allocation6], 1
    %16 = vsyncpa %s15, 0
    %17 = vsyncpa [#allocation4], 0
    %s18 = scalar_lea.sflag [#allocation4], 1
    %19 = vsyncpa %s18, 0
    %20 = vsyncpa [#allocation9], 0
    %s21 = scalar_lea.sflag [#allocation9], 1
    %22 = vsyncpa %s21, 0
    %23 = vsyncpa [#allocation12], 0
    %s24 = scalar_lea.sflag [#allocation12], 1
    %25 = vsyncpa %s24, 0
    loop: start=0, step=1, limit=4
    $region2: #{tpu_custom_call.1} parent=1 // loop_pre_header
      _
    $region3: #{tpu_custom_call.1} parent=1 // loop_header
      %s27 = sphi 0, %s31
      %p28 = scmp.ge.s32.totalorder %s27, 4
      %s34 = sphi 0, %s53
      %s35 = sphi 0, %s49
      %s36 = sphi 0, %s45
      %s37 = sphi 0, %s34
      %s38 = sphi 0, %s35
      %s39 = sphi 0, %s36
      %s40 = sphi 0, %s37
      %s41 = sphi 0, %s38
      %s42 = sphi 0, %s39
      %s60 = sphi 0, %s62
      %s63 = sphi 0, %s60
      %s64 = sphi 0, %s63
      %s80 = sphi 0, %s64
      %s90 = sphi 0, %s92
      %s93 = sphi 0, %s90
      %s94 = sphi 0, %s93
      %s110 = sphi 0, %s94
      %s118 = sphi 0, %s120
      %s121 = sphi 0, %s118
      %s122 = sphi 0, %s121
      %s138 = sphi 0, %s122
      %s146 = sphi 0, %s148
      %s149 = sphi 0, %s146
      %s150 = sphi 0, %s149
      %s166 = sphi 0, %s150
      %s174 = sphi 0, %s176
      %s177 = sphi 0, %s174
      %s178 = sphi 0, %s177
      %s194 = sphi 0, %s178
      %s202 = sphi 0, %s204
      %s205 = sphi 0, %s202
      %s206 = sphi 0, %s205
      %s222 = sphi 0, %s206
    $region4: #{tpu_custom_call.1} parent=1 // loop_header_branch
      %30 = sbr.rel (%p28) target = $region8
    $region5: #{tpu_custom_call.1} parent=1 // loop_body
      %s32 = ssub.s32 %s27, 1
      %s33 = ssub.s32 %s27, 2
      %s43 = sadd.s32 1, %s36
      %p44 = scmp.ge.s32.totalorder %s43, 1
      %s45 = scalar_select %p44, 0, %s43
      %s46 = sadd.s32 1, %s35
      %s47 = scalar_select %p44, %s46, %s35
      %p48 = scmp.ge.s32.totalorder %s47, 1
      %s49 = scalar_select %p48, 0, %s47
      %s50 = sadd.s32 1, %s34
      %s51 = scalar_select %p48, %s50, %s34
      %p52 = scmp.ge.s32.totalorder %s51, 2
      %s53 = scalar_select %p52, 0, %s51
      %s54 = sadd.s32 %s35, %s36
      %s55 = sadd.s32 %s49, %s45
      %s56 = ssub.s32 %s34, %s53
      %s57 = ssub.s32 %s54, %s55
      %s58 = sor.u32 %s56, %s57
      %p59 = scmp.eq.s32.totalorder %s58, 0
      %s61 = sadd.s32 %s60, 1
      %s62 = scalar_select %p59, %s60, %s61
      %p65 = pneg %p59
      %p66 = scmp.eq.s32.totalorder %s27, 1
      %p67 = por %p65, %p66
      %p68 = scmp.ne.s32.totalorder %s60, %s63
      %p69 = scmp.eq.s32.totalorder %s27, 0
      %p70 = por %p68, %p69
      %p71 = scmp.ne.s32.totalorder %s60, %s63
      %p72 = scmp.eq.s32.totalorder %s32, 1
      %p73 = por %p71, %p72
      %p74 = scmp.ne.s32.totalorder %s63, %s64
      %p75 = scmp.eq.s32.totalorder %s32, 0
      %p76 = por %p74, %p75
      %p77 = scmp.ne.s32.totalorder %s63, %s64
      %p78 = scmp.eq.s32.totalorder %s33, 1
      %p79 = por %p77, %p78
      %p81 = scmp.ne.s32.totalorder %s64, %s80
      %p82 = scmp.eq.s32.totalorder %s33, 0
      %p83 = por %p81, %p82
      %s84 = sadd.s32 %s35, %s36
      %s85 = sadd.s32 %s49, %s45
      %s86 = ssub.s32 %s34, %s53
      %s87 = ssub.s32 %s84, %s85
      %s88 = sor.u32 %s86, %s87
      %p89 = scmp.eq.s32.totalorder %s88, 0
      %s91 = sadd.s32 %s90, 1
      %s92 = scalar_select %p89, %s90, %s91
      %p95 = pneg %p89
      %p96 = scmp.eq.s32.totalorder %s27, 1
      %p97 = por %p95, %p96
      %p98 = scmp.ne.s32.totalorder %s90, %s93
      %p99 = scmp.eq.s32.totalorder %s27, 0
      %p100 = por %p98, %p99
      %p101 = scmp.ne.s32.totalorder %s90, %s93
      %p102 = scmp.eq.s32.totalorder %s32, 1
      %p103 = por %p101, %p102
      %p104 = scmp.ne.s32.totalorder %s93, %s94
      %p105 = scmp.eq.s32.totalorder %s32, 0
      %p106 = por %p104, %p105
      %p107 = scmp.ne.s32.totalorder %s93, %s94
      %p108 = scmp.eq.s32.totalorder %s33, 1
      %p109 = por %p107, %p108
      %p111 = scmp.ne.s32.totalorder %s94, %s110
      %p112 = scmp.eq.s32.totalorder %s33, 0
      %p113 = por %p111, %p112
      %s114 = sadd.s32 %s34, %s35
      %s115 = sadd.s32 %s53, %s49
      %s116 = ssub.s32 %s114, %s115
      %p117 = scmp.eq.s32.totalorder %s116, 0
      %s119 = sadd.s32 %s118, 1
      %s120 = scalar_select %p117, %s118, %s119
      %p123 = pneg %p117
      %p124 = scmp.eq.s32.totalorder %s27, 1
      %p125 = por %p123, %p124
      %p126 = scmp.ne.s32.totalorder %s118, %s121
      %p127 = scmp.eq.s32.totalorder %s27, 0
      %p128 = por %p126, %p127
      %p129 = scmp.ne.s32.totalorder %s118, %s121
      %p130 = scmp.eq.s32.totalorder %s32, 1
      %p131 = por %p129, %p130
      %p132 = scmp.ne.s32.totalorder %s121, %s122
      %p133 = scmp.eq.s32.totalorder %s32, 0
      %p134 = por %p132, %p133
      %p135 = scmp.ne.s32.totalorder %s121, %s122
      %p136 = scmp.eq.s32.totalorder %s33, 1
      %p137 = por %p135, %p136
      %p139 = scmp.ne.s32.totalorder %s122, %s138
      %p140 = scmp.eq.s32.totalorder %s33, 0
      %p141 = por %p139, %p140
      %s142 = sadd.s32 %s34, %s35
      %s143 = sadd.s32 %s53, %s49
      %s144 = ssub.s32 %s142, %s143
      %p145 = scmp.eq.s32.totalorder %s144, 0
      %s147 = sadd.s32 %s146, 1
      %s148 = scalar_select %p145, %s146, %s147
      %p151 = pneg %p145
      %p152 = scmp.eq.s32.totalorder %s27, 1
      %p153 = por %p151, %p152
      %p154 = scmp.ne.s32.totalorder %s146, %s149
      %p155 = scmp.eq.s32.totalorder %s27, 0
      %p156 = por %p154, %p155
      %p157 = scmp.ne.s32.totalorder %s146, %s149
      %p158 = scmp.eq.s32.totalorder %s32, 1
      %p159 = por %p157, %p158
      %p160 = scmp.ne.s32.totalorder %s149, %s150
      %p161 = scmp.eq.s32.totalorder %s32, 0
      %p162 = por %p160, %p161
      %p163 = scmp.ne.s32.totalorder %s149, %s150
      %p164 = scmp.eq.s32.totalorder %s33, 1
      %p165 = por %p163, %p164
      %p167 = scmp.ne.s32.totalorder %s150, %s166
      %p168 = scmp.eq.s32.totalorder %s33, 0
      %p169 = por %p167, %p168
      %s170 = sadd.s32 %s34, %s35
      %s171 = sadd.s32 %s53, %s49
      %s172 = ssub.s32 %s170, %s171
      %p173 = scmp.eq.s32.totalorder %s172, 0
      %s175 = sadd.s32 %s174, 1
      %s176 = scalar_select %p173, %s174, %s175
      %p179 = pneg %p173
      %p180 = scmp.eq.s32.totalorder %s27, 1
      %p181 = por %p179, %p180
      %p182 = scmp.ne.s32.totalorder %s174, %s177
      %p183 = scmp.eq.s32.totalorder %s27, 0
      %p184 = por %p182, %p183
      %p185 = scmp.ne.s32.totalorder %s174, %s177
      %p186 = scmp.eq.s32.totalorder %s32, 1
      %p187 = por %p185, %p186
      %p188 = scmp.ne.s32.totalorder %s177, %s178
      %p189 = scmp.eq.s32.totalorder %s32, 0
      %p190 = por %p188, %p189
      %p191 = scmp.ne.s32.totalorder %s177, %s178
      %p192 = scmp.eq.s32.totalorder %s33, 1
      %p193 = por %p191, %p192
      %p195 = scmp.ne.s32.totalorder %s178, %s194
      %p196 = scmp.eq.s32.totalorder %s33, 0
      %p197 = por %p195, %p196
      %s198 = sadd.s32 %s34, %s35
      %s199 = sadd.s32 %s53, %s49
      %s200 = ssub.s32 %s198, %s199
      %p201 = scmp.eq.s32.totalorder %s200, 0
      %s203 = sadd.s32 %s202, 1
      %s204 = scalar_select %p201, %s202, %s203
      %p207 = pneg %p201
      %p208 = scmp.eq.s32.totalorder %s27, 1
      %p209 = por %p207, %p208
      %p210 = scmp.ne.s32.totalorder %s202, %s205
      %p211 = scmp.eq.s32.totalorder %s27, 0
      %p212 = por %p210, %p211
      %p213 = scmp.ne.s32.totalorder %s202, %s205
      %p214 = scmp.eq.s32.totalorder %s32, 1
      %p215 = por %p213, %p214
      %p216 = scmp.ne.s32.totalorder %s205, %s206
      %p217 = scmp.eq.s32.totalorder %s32, 0
      %p218 = por %p216, %p217
      %p219 = scmp.ne.s32.totalorder %s205, %s206
      %p220 = scmp.eq.s32.totalorder %s33, 1
      %p221 = por %p219, %p220
      %p223 = scmp.ne.s32.totalorder %s206, %s222
      %p224 = scmp.eq.s32.totalorder %s33, 0
      %p225 = por %p223, %p224
      %p226 = scmp.le.s32.totalorder 1, %s27
      %p227 = scmp.lt.s32.totalorder %s27, 3
      %p228 = pnand %p226, %p227
      %p229 = pneg %p228
      // Predicated region
      $region9: #{tpu_custom_call.1} parent=5 // pred_check
        _
      $region10: #{tpu_custom_call.1} parent=5 // pred_check_branch
        %231 = sbr.rel (%p228) target = $region12
      $region11: #{tpu_custom_call.1} parent=5 // pred_region
        %s232 = ssub.s32 %s27, 1
      $region12: #{tpu_custom_call.1} parent=5 // pred_fallthru
        _
      %p233 = scmp.lt.s32.totalorder %s27, 2
      // Predicated region
      $region13: #{tpu_custom_call.1} parent=5 // pred_check
        %p234 = pneg %p233
      $region14: #{tpu_custom_call.1} parent=5 // pred_check_branch
        %236 = sbr.rel (%p234) target = $region16
      $region15: #{tpu_custom_call.1} parent=5 // pred_region
        // Predicated region
        $region17: #{tpu_custom_call.1} parent=15 // pred_check
          %p237 = pneg %p70
        $region18: #{tpu_custom_call.1} parent=15 // pred_check_branch
          %239 = sbr.rel (%p237) target = $region20
        $region19: #{tpu_custom_call.1} parent=15 // pred_region
          %s240 = sand.u32 %s60, 1
          %s241 = scalar_lea.sflag [#allocation3], %s240
          %s242 = sand.u32 %s60, 1
          %s243 = smul.addr %s242, 8
          %s244 = scalar_lea.vmem [#allocation2], %s243
          %s245 = sadd.s32 %s35, %s36
          %s247 = ssub.s32 128, 128
          %248 = vsyncadd %s241, %s247
          %s249 = smul.addr %s34, 4
          %s250 = sadd.s32 %s245, %s249
          %s251 = smul.addr %s250, 32
          %s252 = scalar_lea.hbm %s0, %s251
          %s253 = sshll.u32 %s244, 4
          %s254 = int_to_ptr.vmem [resolvable:$true] %s253
          %259 = dma.hbm_to_vmem [thread:$0]  %s252, 128, %s254, %s241, 32, 32, 2
        $region20: #{tpu_custom_call.1} parent=15 // pred_fallthru
          _
        // Predicated region
        $region21: #{tpu_custom_call.1} parent=15 // pred_check
          %p260 = pneg %p100
        $region22: #{tpu_custom_call.1} parent=15 // pred_check_branch
          %262 = sbr.rel (%p260) target = $region24
        $region23: #{tpu_custom_call.1} parent=15 // pred_region
          %s263 = sand.u32 %s90, 1
          %s264 = scalar_lea.sflag [#allocation6], %s263
          %s265 = sand.u32 %s90, 1
          %s266 = smul.addr %s265, 8
          %s267 = scalar_lea.vmem [#allocation5], %s266
          %s268 = sadd.s32 %s35, %s36
          %s270 = ssub.s32 128, 128
          %271 = vsyncadd %s264, %s270
          %s272 = smul.addr %s34, 4
          %s273 = sadd.s32 %s268, %s272
          %s274 = smul.addr %s273, 32
          %s275 = scalar_lea.hbm %s1, %s274
          %s276 = sshll.u32 %s267, 4
          %s277 = int_to_ptr.vmem [resolvable:$true] %s276
          %282 = dma.hbm_to_vmem [thread:$0]  %s275, 128, %s277, %s264, 32, 32, 2
        $region24: #{tpu_custom_call.1} parent=15 // pred_fallthru
          _
      $region16: #{tpu_custom_call.1} parent=5 // pred_fallthru
        _
      %p283 = scmp.le.s32.totalorder 1, %s27
      %p284 = scmp.lt.s32.totalorder %s27, 3
      %p285 = pnand %p283, %p284
      %p286 = pneg %p285
      // Predicated region
      $region25: #{tpu_custom_call.1} parent=5 // pred_check
        _
      $region26: #{tpu_custom_call.1} parent=5 // pred_check_branch
        %288 = sbr.rel (%p285) target = $region28
      $region27: #{tpu_custom_call.1} parent=5 // pred_region
        %s289 = ssub.s32 %s27, 1
        %s290 = sand.u32 %s63, 1
        %s291 = scalar_lea.sflag [#allocation3], %s290
        %s292 = sand.u32 %s63, 1
        %s293 = smul.addr %s292, 8
        %s294 = scalar_lea.vmem [#allocation2], %s293
        // Predicated region
        $region29: #{tpu_custom_call.1} parent=27 // pred_check
          %p295 = pneg %p76
        $region30: #{tpu_custom_call.1} parent=27 // pred_check_branch
          %297 = sbr.rel (%p295) target = $region32
        $region31: #{tpu_custom_call.1} parent=27 // pred_region
          %298 = dma.done %s291, 128
        $region32: #{tpu_custom_call.1} parent=27 // pred_fallthru
          _
        %s299 = sand.u32 %s93, 1
        %s300 = scalar_lea.sflag [#allocation6], %s299
        %s301 = sand.u32 %s93, 1
        %s302 = smul.addr %s301, 8
        %s303 = scalar_lea.vmem [#allocation5], %s302
        // Predicated region
        $region33: #{tpu_custom_call.1} parent=27 // pred_check
          %p304 = pneg %p106
        $region34: #{tpu_custom_call.1} parent=27 // pred_check_branch
          %306 = sbr.rel (%p304) target = $region36
        $region35: #{tpu_custom_call.1} parent=27 // pred_region
          %307 = dma.done %s300, 128
        $region36: #{tpu_custom_call.1} parent=27 // pred_fallthru
          _
        %s308 = sand.u32 %s63, 1
        %s309 = scalar_lea.sflag [#allocation3], %s308
        %s310 = sand.u32 %s63, 1
        %s311 = smul.addr %s310, 8
        %s312 = scalar_lea.vmem [#allocation2], %s311
        %p313 = pneg %p76
        %p314 = pneg %p73
        %s315 = sand.u32 %s93, 1
        %s316 = scalar_lea.sflag [#allocation6], %s315
        %s317 = sand.u32 %s93, 1
        %s318 = smul.addr %s317, 8
        %s319 = scalar_lea.vmem [#allocation5], %s318
        %p320 = pneg %p106
        %p321 = pneg %p103
        %p322 = pneg %p134
        %p323 = pneg %p131
        %s324 = sand.u32 %s121, 1
        %s325 = scalar_lea.sflag [#allocation4], %s324
        %s326 = sand.u32 %s121, 1
        %s327 = scalar_lea.vmem [#allocation7], %s326
        %p328 = pneg %p162
        %p329 = pneg %p159
        %s330 = sand.u32 %s32, 1
        %s331 = scalar_lea.sflag [#allocation9], %s330
        %s332 = sand.u32 %s149, 1
        %s333 = smul.addr %s332, 4
        %s334 = scalar_lea.vmem [#allocation8], %s333
        %p335 = pneg %p190
        %p336 = pneg %p187
        %s337 = sand.u32 %s32, 1
        %s338 = scalar_lea.sflag [#allocation9], %s337
        %s339 = sand.u32 %s177, 1
        %s340 = smul.addr %s339, 4
        %s341 = scalar_lea.vmem [#allocation10], %s340
        %p342 = pneg %p218
        %p343 = pneg %p215
        %s344 = sand.u32 %s205, 1
        %s345 = scalar_lea.sflag [#allocation12], %s344
        %s346 = sand.u32 %s205, 1
        %s347 = smul.addr %s346, 4
        %s348 = scalar_lea.vmem [#allocation11], %s347
        %s349 = sadd.s32 %s38, %s39
        %s350 = sadd.s32 %s38, %s39
        %s351 = sadd.s32 %s37, %s38
        %s352 = sadd.s32 %s37, %s38
        %s353 = sadd.s32 %s37, %s38
        %s354 = sadd.s32 %s37, %s38
        %p355 = scmp.eq.s32.totalorder %s39, 0
        // Predicated region
        $region37: #{tpu_custom_call.1} parent=27 // pred_check
          %p356 = pneg %p355
        $region38: #{tpu_custom_call.1} parent=27 // pred_check_branch
          %358 = sbr.rel (%p356) target = $region40
        $region39: #{tpu_custom_call.1} parent=27 // pred_region
          %359 = vst [vmem:[%s327] sm:$0x1] 0.0
          %360 = vst [vmem:[%s334] sm:$0xf] 0.0
          %361 = vst [vmem:[%s341] sm:$0xf] 0.0
          %362 = vst [vmem:[%s348] sm:$0xf] 0.0
        $region40: #{tpu_custom_call.1} parent=27 // pred_fallthru
          _
        %v363 = vld [vmem:[%s294] sm:$0x3]
        %s364 = scalar_lea.vmem %s294, 2 [#allocation2]
        %v365 = vld [vmem:[%s364] sm:$0x3]
        %s366 = scalar_lea.vmem %s294, 4 [#allocation2]
        %v367 = vld [vmem:[%s366] sm:$0x3]
        %s368 = scalar_lea.vmem %s294, 6 [#allocation2]
        %v369 = vld [vmem:[%s368] sm:$0x3]
        %v370 = vld [vmem:[%s303] sm:$0x3]
        %s371 = scalar_lea.vmem %s303, 2 [#allocation5]
        %v372 = vld [vmem:[%s371] sm:$0x3]
        %s373 = scalar_lea.vmem %s303, 4 [#allocation5]
        %v374 = vld [vmem:[%s373] sm:$0x3]
        %s375 = scalar_lea.vmem %s303, 6 [#allocation5]
        %v376 = vld [vmem:[%s375] sm:$0x3]
        %v377 = vmax.f32 %v363, %v365
        %v378 = vmax.f32 %v377, %v367
        %v379 = vmax.f32 %v378, %v369
        %v380 = vsub.f32 %v363, %v379
        %v381 = vsub.f32 %v365, %v379
        %v382 = vsub.f32 %v367, %v379
        %v383 = vsub.f32 %v369, %v379
        %v384 = vmul.f32 %v380, 1.442695
        %v385 = vpow.pop %v384
        %v386 = vmul.f32 %v381, 1.442695
        %v387 = vpow.pop %v386
        %v388 = vmul.f32 %v382, 1.442695
        %v389 = vpow.pop %v388
        %v390 = vmul.f32 %v383, 1.442695
        %v391 = vpow.pop %v390
        %v392 = vadd.f32 %v385, %v387
        %v393 = vadd.f32 %v392, %v389
        %v394 = vadd.f32 %v393, %v391
        %v395 = vrcp.pop %v394
        %v396 = vmul.f32 %v394, %v395
        %v397 = vsub.f32 2.0, %v396
        %v398 = vmul.f32 %v395, %v397
        %v399 = vmul.f32 %v385, %v398
        %v400 = vmul.f32 %v387, %v398
        %v401 = vmul.f32 %v389, %v398
        %v402 = vmul.f32 %v391, %v398
        %v403 = vlog2.pop %v394
        %v404 = vmul.f32 %v403, 0.6931472
        %v405 = vmax.f32 %v370, %v372
        %v406 = vmax.f32 %v405, %v374
        %v407 = vmax.f32 %v406, %v376
        %vm408 = vcmp.eq.f32.partialorder %v370, %v407
        %vm409 = vcmp.eq.f32.partialorder %v372, %v407
        %vm410 = vmxor %vm408, 1
        %vm411 = vmand %vm409, %vm410
        %vm412 = vmor %vm408, %vm409
        %vm413 = vcmp.eq.f32.partialorder %v374, %v407
        %vm414 = vmxor %vm412, 1
        %vm415 = vmand %vm413, %vm414
        %vm416 = vmor %vm412, %vm413
        %vm417 = vcmp.eq.f32.partialorder %v376, %v407
        %vm418 = vmxor %vm416, 1
        %vm419 = vmand %vm417, %vm418
        %v420 = vsel %vm408, 0.25, 0.0
        %v421 = vsel %vm408, %v380, 0.0
        %v422 = vsel %vm411, 0.8, %v420
        %v423 = vsel %vm411, %v381, %v421
        %v424 = vsel %vm415, 0.8, %v422
        %v425 = vsel %vm415, %v382, %v423
        %v426 = vsel %vm419, 0.8, %v424
        %v427 = vsel %vm419, %v383, %v425
        %v428 = vsub.f32 0.0, %v426
        %v429 = vsub.f32 %v427, %v404
        %v430 = vmul.f32 %v428, %v429
        %v431 = vmul.f32 %v399, %v370
        %v432 = vmul.f32 %v400, %v372
        %v433 = vmul.f32 %v401, %v374
        %v434 = vmul.f32 %v402, %v376
        %v435 = vadd.f32 %v431, %v432
        %v436 = vadd.f32 %v435, %v433
        %v437 = vadd.f32 %v436, %v434
        %v438 = vsub.f32 1.0, %v437
        %v439 = vmul.f32 %v438, %v438
        %v440 = vmul.f32 %v439, %v430
        %v441 = vld [vmem:[%s334] sm:$0x1]
        %vm442 = vcmask 1041408
        %v443 = vsel %vm442, %v431, 0.0
        %v444 = vrot.slane %v443, 4
        %v445 = vadd.f32 %v443, %v444
        %v446 = vrot.slane %v445, 2
        %v447 = vadd.f32 %v445, %v446
        %v448 = vrot.slane %v447, 1
        %v449 = vadd.f32 %v447, %v448
        %v450 = vadd.f32 %v441, %v449
        %451 = vst [vmem:[%s334] sm:$0x1] %v450
        %v452 = vld [vmem:[%s348] sm:$0x1]
        %v453 = vsel %vm442, %v370, 0.0
        %v454 = vrot.slane %v453, 4
        %v455 = vadd.f32 %v453, %v454
        %v456 = vrot.slane %v455, 2
        %v457 = vadd.f32 %v455, %v456
        %v458 = vrot.slane %v457, 1
        %v459 = vadd.f32 %v457, %v458
        %v460 = vadd.f32 %v452, %v459
        %461 = vst [vmem:[%s348] sm:$0x1] %v460
        %v462 = vld [vmem:[%s334 + $0x1] sm:$0x1]
        %v463 = vsel %vm442, %v432, 0.0
        %v464 = vrot.slane %v463, 4
        %v465 = vadd.f32 %v463, %v464
        %v466 = vrot.slane %v465, 2
        %v467 = vadd.f32 %v465, %v466
        %v468 = vrot.slane %v467, 1
        %v469 = vadd.f32 %v467, %v468
        %v470 = vadd.f32 %v462, %v469
        %471 = vst [vmem:[%s334 + $0x1] sm:$0x1] %v470
        %v472 = vld [vmem:[%s348 + $0x1] sm:$0x1]
        %v473 = vsel %vm442, %v372, 0.0
        %v474 = vrot.slane %v473, 4
        %v475 = vadd.f32 %v473, %v474
        %v476 = vrot.slane %v475, 2
        %v477 = vadd.f32 %v475, %v476
        %v478 = vrot.slane %v477, 1
        %v479 = vadd.f32 %v477, %v478
        %v480 = vadd.f32 %v472, %v479
        %481 = vst [vmem:[%s348 + $0x1] sm:$0x1] %v480
        %v482 = vld [vmem:[%s334 + $0x2] sm:$0x1]
        %v483 = vsel %vm442, %v433, 0.0
        %v484 = vrot.slane %v483, 4
        %v485 = vadd.f32 %v483, %v484
        %v486 = vrot.slane %v485, 2
        %v487 = vadd.f32 %v485, %v486
        %v488 = vrot.slane %v487, 1
        %v489 = vadd.f32 %v487, %v488
        %v490 = vadd.f32 %v482, %v489
        %491 = vst [vmem:[%s334 + $0x2] sm:$0x1] %v490
        %v492 = vld [vmem:[%s348 + $0x2] sm:$0x1]
        %v493 = vsel %vm442, %v374, 0.0
        %v494 = vrot.slane %v493, 4
        %v495 = vadd.f32 %v493, %v494
        %v496 = vrot.slane %v495, 2
        %v497 = vadd.f32 %v495, %v496
        %v498 = vrot.slane %v497, 1
        %v499 = vadd.f32 %v497, %v498
        %v500 = vadd.f32 %v492, %v499
        %501 = vst [vmem:[%s348 + $0x2] sm:$0x1] %v500
        %v502 = vld [vmem:[%s334 + $0x3] sm:$0x1]
        %v503 = vsel %vm442, %v434, 0.0
        %v504 = vrot.slane %v503, 4
        %v505 = vadd.f32 %v503, %v504
        %v506 = vrot.slane %v505, 2
        %v507 = vadd.f32 %v505, %v506
        %v508 = vrot.slane %v507, 1
        %v509 = vadd.f32 %v507, %v508
        %v510 = vadd.f32 %v502, %v509
        %511 = vst [vmem:[%s334 + $0x3] sm:$0x1] %v510
        %v512 = vld [vmem:[%s348 + $0x3] sm:$0x1]
        %v513 = vsel %vm442, %v376, 0.0
        %v514 = vrot.slane %v513, 4
        %v515 = vadd.f32 %v513, %v514
        %v516 = vrot.slane %v515, 2
        %v517 = vadd.f32 %v515, %v516
        %v518 = vrot.slane %v517, 1
        %v519 = vadd.f32 %v517, %v518
        %v520 = vadd.f32 %v512, %v519
        %521 = vst [vmem:[%s348 + $0x3] sm:$0x1] %v520
        %v522 = vld [vmem:[%s327] sm:$0x1]
        %v523 = vsel %vm442, %v440, 0.0
        %v524 = vrot.slane %v523, 4
        %v525 = vadd.f32 %v523, %v524
        %v526 = vrot.slane %v525, 2
        %v527 = vadd.f32 %v525, %v526
        %v528 = vrot.slane %v527, 1
        %v529 = vadd.f32 %v527, %v528
        %v530 = vadd.f32 %v522, %v529
        %531 = vst [vmem:[%s327] sm:$0x1] %v530
        %v532 = vld [vmem:[%s341] sm:$0x1]
        %v533 = vsel %vm442, %v399, 0.0
        %v534 = vrot.slane %v533, 4
        %v535 = vadd.f32 %v533, %v534
        %v536 = vrot.slane %v535, 2
        %v537 = vadd.f32 %v535, %v536
        %v538 = vrot.slane %v537, 1
        %v539 = vadd.f32 %v537, %v538
        %v540 = vadd.f32 %v532, %v539
        %541 = vst [vmem:[%s341] sm:$0x1] %v540
        %v542 = vld [vmem:[%s341 + $0x1] sm:$0x1]
        %v543 = vsel %vm442, %v400, 0.0
        %v544 = vrot.slane %v543, 4
        %v545 = vadd.f32 %v543, %v544
        %v546 = vrot.slane %v545, 2
        %v547 = vadd.f32 %v545, %v546
        %v548 = vrot.slane %v547, 1
        %v549 = vadd.f32 %v547, %v548
        %v550 = vadd.f32 %v542, %v549
        %551 = vst [vmem:[%s341 + $0x1] sm:$0x1] %v550
        %v552 = vld [vmem:[%s341 + $0x2] sm:$0x1]
        %v553 = vsel %vm442, %v401, 0.0
        %v554 = vrot.slane %v553, 4
        %v555 = vadd.f32 %v553, %v554
        %v556 = vrot.slane %v555, 2
        %v557 = vadd.f32 %v555, %v556
        %v558 = vrot.slane %v557, 1
        %v559 = vadd.f32 %v557, %v558
        %v560 = vadd.f32 %v552, %v559
        %561 = vst [vmem:[%s341 + $0x2] sm:$0x1] %v560
        %v562 = vld [vmem:[%s341 + $0x3] sm:$0x1]
        %v563 = vsel %vm442, %v402, 0.0
        %v564 = vrot.slane %v563, 4
        %v565 = vadd.f32 %v563, %v564
        %v566 = vrot.slane %v565, 2
        %v567 = vadd.f32 %v565, %v566
        %v568 = vrot.slane %v567, 1
        %v569 = vadd.f32 %v567, %v568
        %v570 = vadd.f32 %v562, %v569
        %571 = vst [vmem:[%s341 + $0x3] sm:$0x1] %v570
        %s572 = sand.u32 %s121, 1
        %s573 = scalar_lea.sflag [#allocation4], %s572
        %s574 = sand.u32 %s121, 1
        %s575 = scalar_lea.vmem [#allocation7], %s574
        %s576 = sand.u32 %s32, 1
        %s577 = scalar_lea.sflag [#allocation9], %s576
        %s578 = sand.u32 %s149, 1
        %s579 = smul.addr %s578, 4
        %s580 = scalar_lea.vmem [#allocation8], %s579
        %s581 = sand.u32 %s32, 1
        %s582 = scalar_lea.sflag [#allocation9], %s581
        %s583 = sand.u32 %s177, 1
        %s584 = smul.addr %s583, 4
        %s585 = scalar_lea.vmem [#allocation10], %s584
        %s586 = sand.u32 %s205, 1
        %s587 = scalar_lea.sflag [#allocation12], %s586
        %s588 = sand.u32 %s205, 1
        %s589 = smul.addr %s588, 4
        %s590 = scalar_lea.vmem [#allocation11], %s589
        // Predicated region
        $region41: #{tpu_custom_call.1} parent=27 // pred_check
          %p591 = pneg %p131
        $region42: #{tpu_custom_call.1} parent=27 // pred_check_branch
          %593 = sbr.rel (%p591) target = $region44
        $region43: #{tpu_custom_call.1} parent=27 // pred_region
          %s594 = sadd.s32 %s37, %s38
          %s596 = ssub.s32 16, 16
          %597 = vsyncadd %s573, %s596
          %s598 = smul.addr %s594, 16
          %s599 = scalar_lea.hbm %s2, %s598
          %s601 = sshll.u32 %s575, 4
          %s602 = int_to_ptr.vmem [resolvable:$true] %s601
          %604 = dma.vmem_to_hbm [thread:$0]  %s602, 16, %s599, %s573
        $region44: #{tpu_custom_call.1} parent=27 // pred_fallthru
          _
        // Predicated region
        $region45: #{tpu_custom_call.1} parent=27 // pred_check
          %p605 = pneg %p159
        $region46: #{tpu_custom_call.1} parent=27 // pred_check_branch
          %607 = sbr.rel (%p605) target = $region48
        $region47: #{tpu_custom_call.1} parent=27 // pred_region
          %s608 = sadd.s32 %s37, %s38
          %s610 = ssub.s32 64, 64
          %611 = vsyncadd %s577, %s610
          %s612 = smul.addr %s608, 64
          %s613 = scalar_lea.hbm %s3, %s612
          %s615 = sshll.u32 %s580, 4
          %s616 = int_to_ptr.vmem [resolvable:$true] %s615
          %618 = dma.vmem_to_hbm [thread:$0]  %s616, 64, %s613, %s577
        $region48: #{tpu_custom_call.1} parent=27 // pred_fallthru
          _
        // Predicated region
        $region49: #{tpu_custom_call.1} parent=27 // pred_check
          %p619 = pneg %p187
        $region50: #{tpu_custom_call.1} parent=27 // pred_check_branch
          %621 = sbr.rel (%p619) target = $region52
        $region51: #{tpu_custom_call.1} parent=27 // pred_region
          %s622 = sadd.s32 %s37, %s38
          %s624 = ssub.s32 64, 64
          %625 = vsyncadd %s582, %s624
          %s626 = smul.addr %s622, 64
          %s627 = scalar_lea.hbm %s4, %s626
          %s629 = sshll.u32 %s585, 4
          %s630 = int_to_ptr.vmem [resolvable:$true] %s629
          %632 = dma.vmem_to_hbm [thread:$0]  %s630, 64, %s627, %s582
        $region52: #{tpu_custom_call.1} parent=27 // pred_fallthru
          _
        // Predicated region
        $region53: #{tpu_custom_call.1} parent=27 // pred_check
          %p633 = pneg %p215
        $region54: #{tpu_custom_call.1} parent=27 // pred_check_branch
          %635 = sbr.rel (%p633) target = $region56
        $region55: #{tpu_custom_call.1} parent=27 // pred_region
          %s636 = sadd.s32 %s37, %s38
          %s638 = ssub.s32 64, 64
          %639 = vsyncadd %s587, %s638
          %s640 = smul.addr %s636, 64
          %s641 = scalar_lea.hbm %s5, %s640
          %s643 = sshll.u32 %s590, 4
          %s644 = int_to_ptr.vmem [resolvable:$true] %s643
          %646 = dma.vmem_to_hbm [thread:$0]  %s644, 64, %s641, %s587
        $region56: #{tpu_custom_call.1} parent=27 // pred_fallthru
          _
      $region28: #{tpu_custom_call.1} parent=5 // pred_fallthru
        _
      %p647 = scmp.le.s32.totalorder 2, %s27
      // Predicated region
      $region57: #{tpu_custom_call.1} parent=5 // pred_check
        %p648 = pneg %p647
      $region58: #{tpu_custom_call.1} parent=5 // pred_check_branch
        %650 = sbr.rel (%p648) target = $region60
      $region59: #{tpu_custom_call.1} parent=5 // pred_region
        %s651 = ssub.s32 %s27, 2
        // Predicated region
        $region61: #{tpu_custom_call.1} parent=59 // pred_check
          %p652 = pneg %p137
        $region62: #{tpu_custom_call.1} parent=59 // pred_check_branch
          %654 = sbr.rel (%p652) target = $region64
        $region63: #{tpu_custom_call.1} parent=59 // pred_region
          %s655 = sand.u32 %s122, 1
          %s656 = scalar_lea.sflag [#allocation4], %s655
          %s657 = sand.u32 %s122, 1
          %s658 = scalar_lea.vmem [#allocation7], %s657
          %659 = dma.done %s656, 16
        $region64: #{tpu_custom_call.1} parent=59 // pred_fallthru
          _
        // Predicated region
        $region65: #{tpu_custom_call.1} parent=59 // pred_check
          %p660 = pneg %p165
        $region66: #{tpu_custom_call.1} parent=59 // pred_check_branch
          %662 = sbr.rel (%p660) target = $region68
        $region67: #{tpu_custom_call.1} parent=59 // pred_region
          %s663 = sand.u32 %s33, 1
          %s664 = scalar_lea.sflag [#allocation9], %s663
          %s665 = sand.u32 %s150, 1
          %s666 = smul.addr %s665, 4
          %s667 = scalar_lea.vmem [#allocation8], %s666
          %668 = dma.done %s664, 64
        $region68: #{tpu_custom_call.1} parent=59 // pred_fallthru
          _
        // Predicated region
        $region69: #{tpu_custom_call.1} parent=59 // pred_check
          %p669 = pneg %p193
        $region70: #{tpu_custom_call.1} parent=59 // pred_check_branch
          %671 = sbr.rel (%p669) target = $region72
        $region71: #{tpu_custom_call.1} parent=59 // pred_region
          %s672 = sand.u32 %s33, 1
          %s673 = scalar_lea.sflag [#allocation9], %s672
          %s674 = sand.u32 %s178, 1
          %s675 = smul.addr %s674, 4
          %s676 = scalar_lea.vmem [#allocation10], %s675
          %677 = dma.done %s673, 64
        $region72: #{tpu_custom_call.1} parent=59 // pred_fallthru
          _
        // Predicated region
        $region73: #{tpu_custom_call.1} parent=59 // pred_check
          %p678 = pneg %p221
        $region74: #{tpu_custom_call.1} parent=59 // pred_check_branch
          %680 = sbr.rel (%p678) target = $region76
        $region75: #{tpu_custom_call.1} parent=59 // pred_region
          %s681 = sand.u32 %s206, 1
          %s682 = scalar_lea.sflag [#allocation12], %s681
          %s683 = sand.u32 %s206, 1
          %s684 = smul.addr %s683, 4
          %s685 = scalar_lea.vmem [#allocation11], %s684
          %686 = dma.done %s682, 64
        $region76: #{tpu_custom_call.1} parent=59 // pred_fallthru
          _
      $region60: #{tpu_custom_call.1} parent=5 // pred_fallthru
        _
    $region6: #{tpu_custom_call.1} parent=1 // loop_footer
      %s31 = sadd.s32 1, %s27
    $region7: #{tpu_custom_call.1} parent=1 // loop_footer_branch
      %26 = sbr.rel target = $region3
    $region8: #{tpu_custom_call.1} parent=1 // loop_exit
      _
    %687 = vsyncpa [#allocation3], 1
    %s688 = scalar_lea.sflag [#allocation3], 1
    %689 = vsyncpa %s688, 1
    %690 = vsyncpa [#allocation6], 1
    %s691 = scalar_lea.sflag [#allocation6], 1
    %692 = vsyncpa %s691, 1
    %693 = vsyncpa [#allocation4], 1
    %s694 = scalar_lea.sflag [#allocation4], 1
    %695 = vsyncpa %s694, 1
    %696 = vsyncpa [#allocation9], 1
    %s697 = scalar_lea.sflag [#allocation9], 1
    %698 = vsyncpa %s697, 1
    %699 = vsyncpa [#allocation12], 1
    %s700 = scalar_lea.sflag [#allocation12], 1
    %701 = vsyncpa %s700, 1

</llo_original>
